<compile_context>
chip_gen: v6e
topology: v6e:2x2x1
jax: 0.10.0
libtpu: 0.0.40
codegen_flags: <defaults>
</compile_context>

<pallas_src>
import functools

import jax
import jax.numpy as jnp
from jax.experimental import pallas as pl
from jax.experimental.pallas import tpu as pltpu

STATE_SIZE = 4      # CartPole-v0 observation dim
ACTION_SIZE = 2     # unused by Critic.forward, kept for parity with __init__
H1, H2 = 128, 256


def _round_up(x, m):
    return ((x + m - 1) // m) * m


@functools.lru_cache(maxsize=1)
def _device_kind():
    try:
        return jax.devices()[0].device_kind.lower()
    except Exception:
        return ""


def _pick_batch_tile(batch):
    """MXU-height-matched batch tile, sized so v7x's two TensorCores both get work."""
    kind = _device_kind()
    is_v7 = "v7" in kind
    mxu_rows = 256 if ("v6" in kind or is_v7) else 128
    if is_v7 and batch > 128:
        # 2 TCs per chip: split the batch so the ("parallel",) grid has >= 2 steps.
        return min(256, max(128, _round_up(-(-batch // 2), 8)))
    return min(mxu_rows, max(8, _round_up(batch, 8)))


def _critic_kernel(x_ref, w1_ref, b1_ref, w2_ref, b2_ref, w3_ref, b3_ref,
                   o_ref, *scratch):
    # ---- layer 1: state_size -> 128 on the (otherwise idle) MXU ------------
    h1 = jnp.dot(x_ref[...], w1_ref[...], preferred_element_type=jnp.float32)
    h1 = jnp.maximum(h1 + b1_ref[...], 0.0)                       # (TB, 128) f32

    # ---- layer 2: 128 -> 256, bf16 MXU matmul with f32 accumulation --------
    h2 = jnp.dot(h1.astype(jnp.bfloat16), w2_ref[...],
                 preferred_element_type=jnp.float32)
    h2 = jnp.maximum(h2 + b2_ref[...], 0.0)                       # (TB, 256) f32

    if scratch:                        # h2 VMEM staging only for TB > 128 tiles
        h2_ref, = scratch
        h2_ref[...] = h2
        h2 = h2_ref[...]

    # ---- layer 3: 256 -> 1, lane-dense row output --------------------------
    # Contract w3 (1, 256) with h2 (TB, 256) over the feature dim -> (1, TB):
    # a q@k^T-style MXU pass that avoids both a (TB,1) masked column store and
    # an XLU cross-lane reduction.
    row = jax.lax.dot_general(
        w3_ref[...], h2,
        dimension_numbers=(((1,), (1,)), ((), ())),
        preferred_element_type=jnp.float32)
    o_ref[...] = (row + b3_ref[0, 0]).astype(o_ref.dtype)


@jax.jit
def critic_forward(state, params):
    w1, b1, w2, b2, w3, b3 = params
    B, S = state.shape

    tb = _pick_batch_tile(B)
    num_tiles = pl.cdiv(B, tb)
    stage_h2 = tb > 128

    w2_bf = w2.astype(jnp.bfloat16)   # bf16-native MXU dtype, f32 accumulation in-kernel
    w3_row = w3.reshape(1, H2)        # layer-3 weights as a lane-wide row
    b3_s = b3.reshape(1, 1)           # scalar bias -> SMEM

    scratch_shapes = [pltpu.VMEM((tb, H2), jnp.float32)] if stage_h2 else []

    out = pl.pallas_call(
        _critic_kernel,
        out_shape=jax.ShapeDtypeStruct((num_tiles, tb), jnp.float32),
        grid_spec=pltpu.PrefetchScalarGridSpec(
            num_scalar_prefetch=0,
            grid=(num_tiles,),
            in_specs=[
                pl.BlockSpec((tb, S), lambda i: (i, 0)),            # state tile
                pl.BlockSpec((S, H1), lambda i: (0, 0)),            # W1 (grid-invariant)
                pl.BlockSpec((1, H1), lambda i: (0, 0)),            # b1
                pl.BlockSpec((H1, H2), lambda i: (0, 0)),           # W2 (bf16)
                pl.BlockSpec((1, H2), lambda i: (0, 0)),            # b2
                pl.BlockSpec((1, H2), lambda i: (0, 0)),            # W3 as row
                pl.BlockSpec(memory_space=pltpu.MemorySpace.SMEM),  # b3 scalar
            ],
            out_specs=pl.BlockSpec((1, tb), lambda i: (i, 0)),      # lane-dense row per tile
            scratch_shapes=scratch_shapes,
        ),
        compiler_params=pltpu.CompilerParams(
            dimension_semantics=("parallel",)),
    )(state, w1, b1, w2_bf, b2, w3_row, b3_s)

    # Un-tile the lane-dense slab back to a (B, 1) column; padded rows of the
    # ragged last tile (computed from unspecified input data) are sliced away.
    return out.reshape(num_tiles * tb)[:B].reshape(B, 1)


def init_critic_params(key, state_size=STATE_SIZE):
    """Deterministic init mimicking nn.Linear default (U[-1/sqrt(fan_in), +])."""
    def linear(k, fan_in, fan_out):
        kw, kb = jax.random.split(k)
        bound = 1.0 / jnp.sqrt(fan_in)
        w = jax.random.uniform(kw, (fan_in, fan_out), jnp.float32, -bound, bound)
        b = jax.random.uniform(kb, (1, fan_out), jnp.float32, -bound, bound)
        return w, b

    k1, k2, k3 = jax.random.split(key, 3)
    w1, b1 = linear(k1, state_size, H1)
    w2, b2 = linear(k2, H1, H2)
    w3, b3 = linear(k3, H2, 1)
    return (w1, b1, w2, b2, w3, b3)


def critic_forward_ref(state, params):
    """Pure-JAX (f32) reference of Critic.forward for validation."""
    w1, b1, w2, b2, w3, b3 = params
    h = jnp.maximum(state @ w1 + b1, 0.0)
    h = jnp.maximum(h @ w2 + b2, 0.0)
    return h @ w3 + b3


if __name__ == "__main__":
    key = jax.random.PRNGKey(0)
    kp, kx = jax.random.split(key)

    params = init_critic_params(kp)

    # Small CartPole-shaped batch (same shapes the PyTorch module sees).
    B = 2
    state = jax.random.normal(kx, (B, STATE_SIZE), jnp.float32)
    value = critic_forward(state, params)
    jax.block_until_ready(value)
    ref = critic_forward_ref(state, params)
    assert value.shape == (B, 1)
    # Layer 2 runs in bf16 (f32 accumulation) -> compare at bf16-appropriate tolerance.
    assert jnp.allclose(value, ref, atol=1e-2, rtol=1e-2), (value, ref)

    # Larger batch: exercises MXU-sized tiles plus a ragged (padded) last tile.
    B2 = 300
    state2 = jax.random.normal(jax.random.PRNGKey(1), (B2, STATE_SIZE), jnp.float32)
    value2 = critic_forward(state2, params)
    jax.block_until_ready(value2)
    ref2 = critic_forward_ref(state2, params)
    assert value2.shape == (B2, 1)
    assert jnp.allclose(value2, ref2, atol=1e-2, rtol=1e-2)

    print("KERNEL_OK")
</pallas_src>

<mosaic_0001>
module attributes {stable_mosaic.version = 11 : i64} {
  func.func @_critic_kernel(%arg0: i32, %arg1: memref<8x4xf32, #tpu.memory_space<vmem>>, %arg2: memref<4x128xf32, #tpu.memory_space<vmem>>, %arg3: memref<1x128xf32, #tpu.memory_space<vmem>>, %arg4: memref<128x256xbf16, #tpu.memory_space<vmem>>, %arg5: memref<1x256xf32, #tpu.memory_space<vmem>>, %arg6: memref<1x256xf32, #tpu.memory_space<vmem>>, %arg7: memref<1x1xf32, #tpu.memory_space<smem>>, %arg8: memref<1x8xf32, #tpu.memory_space<vmem>>) attributes {dimension_semantics = [#tpu.dimension_semantics<parallel>], iteration_bounds = array<i64: 1>, scalar_prefetch = 0 : i64, scratch_operands = 0 : i64, tpu.core_type = #tpu.core_type<tc>, window_params = [{transform_indices = @transform_0, window_bounds = array<i64: 8, 4>}, {pipeline_mode = #tpu.pipeline_mode<synchronous>, transform_indices = @transform_1, window_bounds = array<i64: 4, 128>}, {pipeline_mode = #tpu.pipeline_mode<synchronous>, transform_indices = @transform_2, window_bounds = array<i64: 1, 128>}, {pipeline_mode = #tpu.pipeline_mode<synchronous>, transform_indices = @transform_3, window_bounds = array<i64: 128, 256>}, {pipeline_mode = #tpu.pipeline_mode<synchronous>, transform_indices = @transform_4, window_bounds = array<i64: 1, 256>}, {pipeline_mode = #tpu.pipeline_mode<synchronous>, transform_indices = @transform_5, window_bounds = array<i64: 1, 256>}, {transform_indices = @transform_6, window_bounds = array<i64: 1, 1>}, {transform_indices = @transform_7, window_bounds = array<i64: 1, 8>}]} {
    %c0 = arith.constant 0 : index
    %c0_0 = arith.constant 0 : index
    %0 = vector.load %arg1[%c0, %c0_0] : memref<8x4xf32, #tpu.memory_space<vmem>>, vector<8x4xf32>
    %c0_1 = arith.constant 0 : index
    %c0_2 = arith.constant 0 : index
    %1 = vector.load %arg2[%c0_1, %c0_2] : memref<4x128xf32, #tpu.memory_space<vmem>>, vector<4x128xf32>
    %cst = arith.constant dense<0.000000e+00> : vector<8x128xf32>
    %2 = tpu.matmul %0, %1, %cst {dimension_numbers = #tpu.dot_dimension_numbers<[1], [0], [0], [1], [0, 0, 1, 1], [], []>} : vector<8x4xf32>, vector<4x128xf32>, vector<8x128xf32> -> vector<8x128xf32>
    %c0_3 = arith.constant 0 : index
    %c0_4 = arith.constant 0 : index
    %3 = vector.load %arg3[%c0_3, %c0_4] : memref<1x128xf32, #tpu.memory_space<vmem>>, vector<1x128xf32>
    %4 = vector.broadcast %3 : vector<1x128xf32> to vector<8x128xf32>
    %5 = arith.addf %2, %4 : vector<8x128xf32>
    %cst_5 = arith.constant 0.000000e+00 : f32
    %6 = vector.broadcast %cst_5 : f32 to vector<8x128xf32>
    %7 = arith.maximumf %5, %6 : vector<8x128xf32>
    %8 = arith.truncf %7 : vector<8x128xf32> to vector<8x128xbf16>
    %c0_6 = arith.constant 0 : index
    %c0_7 = arith.constant 0 : index
    %9 = vector.load %arg4[%c0_6, %c0_7] : memref<128x256xbf16, #tpu.memory_space<vmem>>, vector<128x256xbf16>
    %cst_8 = arith.constant dense<0.000000e+00> : vector<8x256xf32>
    %10 = tpu.matmul %8, %9, %cst_8 {dimension_numbers = #tpu.dot_dimension_numbers<[1], [0], [0], [1], [0, 0, 1, 1], [], []>} : vector<8x128xbf16>, vector<128x256xbf16>, vector<8x256xf32> -> vector<8x256xf32>
    %c0_9 = arith.constant 0 : index
    %c0_10 = arith.constant 0 : index
    %11 = vector.load %arg5[%c0_9, %c0_10] : memref<1x256xf32, #tpu.memory_space<vmem>>, vector<1x256xf32>
    %12 = vector.broadcast %11 : vector<1x256xf32> to vector<8x256xf32>
    %13 = arith.addf %10, %12 : vector<8x256xf32>
    %cst_11 = arith.constant 0.000000e+00 : f32
    %14 = vector.broadcast %cst_11 : f32 to vector<8x256xf32>
    %15 = arith.maximumf %13, %14 : vector<8x256xf32>
    %c0_12 = arith.constant 0 : index
    %c0_13 = arith.constant 0 : index
    %16 = vector.load %arg6[%c0_12, %c0_13] : memref<1x256xf32, #tpu.memory_space<vmem>>, vector<1x256xf32>
    %cst_14 = arith.constant dense<0.000000e+00> : vector<1x8xf32>
    %17 = tpu.matmul %16, %15, %cst_14 {dimension_numbers = #tpu.dot_dimension_numbers<[1], [1], [0], [0], [0, 0, 1, 0], [], []>} : vector<1x256xf32>, vector<8x256xf32>, vector<1x8xf32> -> vector<1x8xf32>
    %c0_15 = arith.constant 0 : index
    %c0_16 = arith.constant 0 : index
    %18 = memref.load %arg7[%c0_15, %c0_16] : memref<1x1xf32, #tpu.memory_space<smem>>
    %19 = vector.broadcast %18 : f32 to vector<1x8xf32>
    %20 = arith.addf %17, %19 : vector<1x8xf32>
    %c0_17 = arith.constant 0 : index
    %c0_18 = arith.constant 0 : index
    %21 = vector.load %arg8[%c0_17, %c0_18] : memref<1x8xf32, #tpu.memory_space<vmem>>, vector<1x8xf32>
    tpu.vector_store %arg8[%c0_17, %c0_18], %20 {strides = array<i32>} : memref<1x8xf32, #tpu.memory_space<vmem>>, vector<1x8xf32>,
    return
  }
  func.func @transform_0(%arg0: i32) -> (i32, i32) {
    %c0_i32 = arith.constant 0 : i32
    %c0_i32_0 = arith.constant 0 : i32
    return %arg0, %c0_i32 : i32, i32
  }
  func.func @transform_1(%arg0: i32) -> (i32, i32) {
    %c0_i32 = arith.constant 0 : i32
    %c0_i32_0 = arith.constant 0 : i32
    %c0_i32_1 = arith.constant 0 : i32
    return %c0_i32, %c0_i32_0 : i32, i32
  }
  func.func @transform_2(%arg0: i32) -> (i32, i32) {
    %c0_i32 = arith.constant 0 : i32
    %c0_i32_0 = arith.constant 0 : i32
    %c0_i32_1 = arith.constant 0 : i32
    return %c0_i32, %c0_i32_0 : i32, i32
  }
  func.func @transform_3(%arg0: i32) -> (i32, i32) {
    %c0_i32 = arith.constant 0 : i32
    %c0_i32_0 = arith.constant 0 : i32
    %c0_i32_1 = arith.constant 0 : i32
    return %c0_i32, %c0_i32_0 : i32, i32
  }
  func.func @transform_4(%arg0: i32) -> (i32, i32) {
    %c0_i32 = arith.constant 0 : i32
    %c0_i32_0 = arith.constant 0 : i32
    %c0_i32_1 = arith.constant 0 : i32
    return %c0_i32, %c0_i32_0 : i32, i32
  }
  func.func @transform_5(%arg0: i32) -> (i32, i32) {
    %c0_i32 = arith.constant 0 : i32
    %c0_i32_0 = arith.constant 0 : i32
    %c0_i32_1 = arith.constant 0 : i32
    return %c0_i32, %c0_i32_0 : i32, i32
  }
  func.func @transform_6(%arg0: i32) -> (i32, i32) {
    %c0_i32 = arith.constant 0 : i32
    %c0_i32_0 = arith.constant 0 : i32
    %c0_i32_1 = arith.constant 0 : i32
    return %c0_i32, %c0_i32_0 : i32, i32
  }
  func.func @transform_7(%arg0: i32) -> (i32, i32) {
    %c0_i32 = arith.constant 0 : i32
    %c0_i32_0 = arith.constant 0 : i32
    return %arg0, %c0_i32 : i32, i32
  }
}

</mosaic_0001>

<llo_original>
// kernel: critic_forward.1
$region0: #{critic_forward.1}
  #allocation0 [shape = 'u32[]', space=smem, size = 0x4, offset = 0x4, fixed_abs, tag = 'smem constant byte address 0x4 - core index']
  #allocation1 [shape = 'u32[144,128]{1,0:T(1,128)}', space=vmem, size = 0x12000, scoped, tag = 'internal scratch']
  #allocation2 [shape = 'f32[1,1]{1,0:T(1,128)S(6)}', space=smem, size = 0x200, scoped, tag = 'scoped memory for critic_forward.1']
  %s0 = inlined_call_operand.vmem [shape: f32[2,4], index: 0, kind: input, shape index: {}]
  %s1 = inlined_call_operand.vmem [shape: f32[4,128], index: 1, kind: input, shape index: {}]
  %s2 = inlined_call_operand.vmem [shape: f32[1,128], index: 2, kind: input, shape index: {}]
  %s3 = inlined_call_operand.vmem [shape: bf16[128,256], index: 3, kind: input, shape index: {}]
  %s4 = inlined_call_operand.vmem [shape: f32[1,256], index: 4, kind: input, shape index: {}]
  %s5 = inlined_call_operand.vmem [shape: f32[1,256], index: 5, kind: input, shape index: {}]
  %s6 = inlined_call_operand.<no memory space> [shape: f32[1,1], index: 6, kind: input, shape index: {}]
  %s7 = inlined_call_operand.vmem [shape: f32[1,8], index: 7, kind: output, shape index: {}]
  %s8 = sld [smem:[#allocation0]]
  $region38: #{critic_forward.1} parent=0
    _
  %s10 = ssub.s32 1, %s8
  %s11 = scalar_select 0, %s10, %s8
  %12 = sst [smem:[#allocation2]] %s6
  // Predicated region
  $region2: #{critic_forward.1} parent=0 // pred_check
    _
  $region3: #{critic_forward.1} parent=0 // pred_check_branch
    %14 = sbr.rel (0) target = $region5
  $region4: #{critic_forward.1} parent=0 // pred_region
    _
  $region5: #{critic_forward.1} parent=0 // pred_fallthru
    _
  // Predicated region
  $region6: #{critic_forward.1} parent=0 // pred_check
    _
  $region7: #{critic_forward.1} parent=0 // pred_check_branch
    %16 = sbr.rel (0) target = $region9
  $region8: #{critic_forward.1} parent=0 // pred_region
    _
  $region9: #{critic_forward.1} parent=0 // pred_fallthru
    _
  // Predicated region
  $region10: #{critic_forward.1} parent=0 // pred_check
    _
  $region11: #{critic_forward.1} parent=0 // pred_check_branch
    %18 = sbr.rel (0) target = $region13
  $region12: #{critic_forward.1} parent=0 // pred_region
    _
  $region13: #{critic_forward.1} parent=0 // pred_fallthru
    _
  // Predicated region
  $region14: #{critic_forward.1} parent=0 // pred_check
    _
  $region15: #{critic_forward.1} parent=0 // pred_check_branch
    %20 = sbr.rel (0) target = $region17
  $region16: #{critic_forward.1} parent=0 // pred_region
    _
  $region17: #{critic_forward.1} parent=0 // pred_fallthru
    _
  // Predicated region
  $region18: #{critic_forward.1} parent=0 // pred_check
    _
  $region19: #{critic_forward.1} parent=0 // pred_check_branch
    %22 = sbr.rel (0) target = $region21
  $region20: #{critic_forward.1} parent=0 // pred_region
    _
  $region21: #{critic_forward.1} parent=0 // pred_fallthru
    _
  // Predicated region
  $region22: #{critic_forward.1} parent=0 // pred_check
    _
  $region23: #{critic_forward.1} parent=0 // pred_check_branch
    %24 = sbr.rel (0) target = $region25
  $region24: #{critic_forward.1} parent=0 // pred_region
    _
  $region25: #{critic_forward.1} parent=0 // pred_fallthru
    _
  // Predicated region
  $region26: #{critic_forward.1} parent=0 // pred_check
    _
  $region27: #{critic_forward.1} parent=0 // pred_check_branch
    %26 = sbr.rel (0) target = $region29
  $region28: #{critic_forward.1} parent=0 // pred_region
    _
  $region29: #{critic_forward.1} parent=0 // pred_fallthru
    _
  %v28 = vld [vmem:[%s0] sm:$0xff]
  %v29 = vld [vmem:[%s1] sm:$0xf]
  %v30 = vld [vmem:[%s2] sm:$0x1]
  %v32 = vlaneseq
  %v33 = vshrl.u32 %v32, 7
  %v34 = vsub.s32 0, %v33
  %v35 = vrot.slane %v30, %v34
  %vm37 = vcmask 31744
  %v39 = vsel %vm37, %v28, 0
  %vm41 = vcmask 1043456
  %v43 = vsel %vm41, %v29, 0
  %45 = vmatprep.subr.mxu0 0.0
  %46 = vmatpush1.msra.mxu0 0.0
  %47 = vmatprep.subr.mxu0 0.0
  %48 = vmatpush1.msra.mxu0 0.0
  %49 = vmatprep.subr.mxu0 0.0
  %50 = vmatpush1.msra.mxu0 0.0
  %51 = vmatprep.subr.mxu0 0.0
  %52 = vmatpush1.msra.mxu0 0.0
  %53 = vmatprep.subr.mxu0 0.0
  %54 = vmatpush1.msra.mxu0 0.0
  %55 = vmatprep.subr.mxu0 0.0
  %56 = vmatpush1.msra.mxu0 0.0
  %57 = vmatprep.subr.mxu0 0.0
  %58 = vmatpush1.msra.mxu0 0.0
  %59 = vmatprep.subr.mxu0 0.0
  %60 = vmatpush1.msra.mxu0 0.0
  %61 = vmatprep.subr.mxu0 0.0
  %62 = vmatpush1.msra.mxu0 0.0
  %63 = vmatprep.subr.mxu0 0.0
  %64 = vmatpush1.msra.mxu0 0.0
  %65 = vmatprep.subr.mxu0 0.0
  %66 = vmatpush1.msra.mxu0 0.0
  %67 = vmatprep.subr.mxu0 0.0
  %68 = vmatpush1.msra.mxu0 0.0
  %69 = vmatprep.subr.mxu0 0.0
  %70 = vmatpush1.msra.mxu0 0.0
  %71 = vmatprep.subr.mxu0 0.0
  %72 = vmatpush1.msra.mxu0 0.0
  %73 = vmatprep.subr.mxu0 0.0
  %74 = vmatpush1.msra.mxu0 0.0
  %75 = vmatprep.subr.mxu0 0.0
  %76 = vmatpush1.msra.mxu0 %v43
  %77 = vmatprep.subr.mxu0 0.0
  %78 = vmatpush2.msra.mxu0 0.0
  %79 = vmatprep.subr.mxu0 0.0
  %80 = vmatpush2.msra.mxu0 0.0
  %81 = vmatprep.subr.mxu0 0.0
  %82 = vmatpush2.msra.mxu0 0.0
  %83 = vmatprep.subr.mxu0 0.0
  %84 = vmatpush2.msra.mxu0 0.0
  %85 = vmatprep.subr.mxu0 0.0
  %86 = vmatpush2.msra.mxu0 0.0
  %87 = vmatprep.subr.mxu0 0.0
  %88 = vmatpush2.msra.mxu0 0.0
  %89 = vmatprep.subr.mxu0 0.0
  %90 = vmatpush2.msra.mxu0 0.0
  %91 = vmatprep.subr.mxu0 0.0
  %92 = vmatpush2.msra.mxu0 0.0
  %93 = vmatprep.subr.mxu0 0.0
  %94 = vmatpush2.msra.mxu0 0.0
  %95 = vmatprep.subr.mxu0 0.0
  %96 = vmatpush2.msra.mxu0 0.0
  %97 = vmatprep.subr.mxu0 0.0
  %98 = vmatpush2.msra.mxu0 0.0
  %99 = vmatprep.subr.mxu0 0.0
  %100 = vmatpush2.msra.mxu0 0.0
  %101 = vmatprep.subr.mxu0 0.0
  %102 = vmatpush2.msra.mxu0 0.0
  %103 = vmatprep.subr.mxu0 0.0
  %104 = vmatpush2.msra.mxu0 0.0
  %105 = vmatprep.subr.mxu0 0.0
  %106 = vmatpush2.msra.mxu0 0.0
  %107 = vmatprep.subr.mxu0 0.0
  %108 = vmatpush2.msra.mxu0 0.0
  %109 = vmatprep.mubr.f32.mxu0 0.0
  %110 = vmatmul.mubr.f32.gmra.mxu0 %v39
  %v111 = vpop.f32.mrf.mxu0
  %v112 = vadd.f32 %v35, %v111
  %v113 = vpop.f32.mrf.mxu0
  %114 = vdwg.mxu0
  %v115 = vmax.f32 %v112, 0.0
  %v116 = vpack.c.bf16 %v115, %v115
  %v117 = vld [vmem:[%s3] sm:$0xff]
  %v118 = vld [vmem:[%s3 + $0x8] sm:$0xff]
  %v119 = vld [vmem:[%s3 + $0x10] sm:$0xff]
  %v120 = vld [vmem:[%s3 + $0x18] sm:$0xff]
  %v121 = vld [vmem:[%s3 + $0x20] sm:$0xff]
  %v122 = vld [vmem:[%s3 + $0x28] sm:$0xff]
  %v123 = vld [vmem:[%s3 + $0x30] sm:$0xff]
  %v124 = vld [vmem:[%s3 + $0x38] sm:$0xff]
  %v125 = vld [vmem:[%s3 + $0x40] sm:$0xff]
  %v126 = vld [vmem:[%s3 + $0x48] sm:$0xff]
  %v127 = vld [vmem:[%s3 + $0x50] sm:$0xff]
  %v128 = vld [vmem:[%s3 + $0x58] sm:$0xff]
  %v129 = vld [vmem:[%s3 + $0x60] sm:$0xff]
  %v130 = vld [vmem:[%s3 + $0x68] sm:$0xff]
  %v131 = vld [vmem:[%s3 + $0x70] sm:$0xff]
  %v132 = vld [vmem:[%s3 + $0x78] sm:$0xff]
  %v133 = vld [vmem:[%s4] sm:$0x3]
  %v135 = vlaneseq
  %v136 = vshrl.u32 %v135, 7
  %v137 = vsub.s32 0, %v136
  %v138 = vrot.slane %v133, %v137
  %v139 = vlaneseq
  %v140 = vshrl.u32 %v139, 7
  %v141 = vsub.s32 1, %v140
  %v142 = vrot.slane %v133, %v141
  %v161 = vunpack.c.l.b16 %v117
  %v162 = vunpack.c.h.b16 %v117
  %v163 = vunpack.c.l.b16 %v118
  %v164 = vunpack.c.h.b16 %v118
  %v165 = vunpack.c.l.b16 %v119
  %v166 = vunpack.c.h.b16 %v119
  %v167 = vunpack.c.l.b16 %v120
  %v168 = vunpack.c.h.b16 %v120
  %v169 = vunpack.c.l.b16 %v121
  %v170 = vunpack.c.h.b16 %v121
  %v171 = vunpack.c.l.b16 %v122
  %v172 = vunpack.c.h.b16 %v122
  %v173 = vunpack.c.l.b16 %v123
  %v174 = vunpack.c.h.b16 %v123
  %v175 = vunpack.c.l.b16 %v124
  %v176 = vunpack.c.h.b16 %v124
  %v177 = vunpack.c.l.b16 %v125
  %v178 = vunpack.c.h.b16 %v125
  %v179 = vunpack.c.l.b16 %v126
  %v180 = vunpack.c.h.b16 %v126
  %v181 = vunpack.c.l.b16 %v127
  %v182 = vunpack.c.h.b16 %v127
  %v183 = vunpack.c.l.b16 %v128
  %v184 = vunpack.c.h.b16 %v128
  %v185 = vunpack.c.l.b16 %v129
  %v186 = vunpack.c.h.b16 %v129
  %v187 = vunpack.c.l.b16 %v130
  %v188 = vunpack.c.h.b16 %v130
  %v189 = vunpack.c.l.b16 %v131
  %v190 = vunpack.c.h.b16 %v131
  %v191 = vunpack.c.l.b16 %v132
  %v192 = vunpack.c.h.b16 %v132
  %v193 = vpack.c.b16 %v163, %v161
  %v194 = vpack.c.b16 %v164, %v162
  %v195 = vpack.c.b16 %v167, %v165
  %v196 = vpack.c.b16 %v168, %v166
  %v197 = vpack.c.b16 %v171, %v169
  %v198 = vpack.c.b16 %v172, %v170
  %v199 = vpack.c.b16 %v175, %v173
  %v200 = vpack.c.b16 %v176, %v174
  %v201 = vpack.c.b16 %v179, %v177
  %v202 = vpack.c.b16 %v180, %v178
  %v203 = vpack.c.b16 %v183, %v181
  %v204 = vpack.c.b16 %v184, %v182
  %v205 = vpack.c.b16 %v187, %v185
  %v206 = vpack.c.b16 %v188, %v186
  %v207 = vpack.c.b16 %v191, %v189
  %v208 = vpack.c.b16 %v192, %v190
  %225 = vmatprep.subr.bf16.mxu0 %v208
  %226 = vmatpush1.bf16.msra.mxu0 %v207
  %227 = vmatprep.subr.bf16.mxu0 %v206
  %228 = vmatpush1.bf16.msra.mxu0 %v205
  %229 = vmatprep.subr.bf16.mxu0 %v204
  %230 = vmatpush1.bf16.msra.mxu0 %v203
  %231 = vmatprep.subr.bf16.mxu0 %v202
  %232 = vmatpush1.bf16.msra.mxu0 %v201
  %233 = vmatprep.subr.bf16.mxu0 %v200
  %234 = vmatpush1.bf16.msra.mxu0 %v199
  %235 = vmatprep.subr.bf16.mxu0 %v198
  %236 = vmatpush1.bf16.msra.mxu0 %v197
  %237 = vmatprep.subr.bf16.mxu0 %v196
  %238 = vmatpush1.bf16.msra.mxu0 %v195
  %239 = vmatprep.subr.bf16.mxu0 %v194
  %240 = vmatpush1.bf16.msra.mxu0 %v193
  %241 = vmatprep.subr.bf16.mxu0 0
  %242 = vmatpush2.bf16.msra.mxu0 0
  %243 = vmatprep.subr.bf16.mxu0 0
  %244 = vmatpush2.bf16.msra.mxu0 0
  %245 = vmatprep.subr.bf16.mxu0 0
  %246 = vmatpush2.bf16.msra.mxu0 0
  %247 = vmatprep.subr.bf16.mxu0 0
  %248 = vmatpush2.bf16.msra.mxu0 0
  %249 = vmatprep.subr.bf16.mxu0 0
  %250 = vmatpush2.bf16.msra.mxu0 0
  %251 = vmatprep.subr.bf16.mxu0 0
  %252 = vmatpush2.bf16.msra.mxu0 0
  %253 = vmatprep.subr.bf16.mxu0 0
  %254 = vmatpush2.bf16.msra.mxu0 0
  %255 = vmatprep.subr.bf16.mxu0 0
  %256 = vmatpush2.bf16.msra.mxu0 0
  %257 = vmatprep.mubr.bf16.mxu0 0
  %258 = vmatmul.mubr.bf16.gmra.mxu0 %v116
  %v259 = vpop.f32.mrf.mxu0
  %v260 = vadd.f32 %v138, %v259
  %v261 = vpop.f32.mrf.mxu0
  %v262 = vadd.f32 %v142, %v261
  %v263 = vpop.f32.mrf.mxu0
  %v264 = vpop.f32.mrf.mxu0
  %265 = vdwg.mxu0
  %v266 = vmax.f32 %v260, 0.0
  %v267 = vmax.f32 %v262, 0.0
  %v268 = vld [vmem:[%s5] sm:$0x3]
  %s269 = sld [smem:[#allocation2]]
  %v270 = vstv %s269
  %v272 = vlaneseq
  %v273 = vshrl.u32 %v272, 7
  %v274 = vsub.s32 0, %v273
  %v275 = vrot.slane %v268, %v274
  %v276 = vlaneseq
  %v277 = vshrl.u32 %v276, 7
  %v278 = vsub.s32 1, %v277
  %v279 = vrot.slane %v268, %v278
  %282 = vmatprep.subr.mxu0 0.0
  %283 = vmatpush1.xpose.msra.mxu0 0.0
  %284 = vmatprep.subr.mxu0 0.0
  %285 = vmatpush1.xpose.msra.mxu0 0.0
  %286 = vmatprep.subr.mxu0 0.0
  %287 = vmatpush1.xpose.msra.mxu0 0.0
  %288 = vmatprep.subr.mxu0 0.0
  %289 = vmatpush1.xpose.msra.mxu0 0.0
  %290 = vmatprep.subr.mxu0 0.0
  %291 = vmatpush1.xpose.msra.mxu0 0.0
  %292 = vmatprep.subr.mxu0 0.0
  %293 = vmatpush1.xpose.msra.mxu0 0.0
  %294 = vmatprep.subr.mxu0 0.0
  %295 = vmatpush1.xpose.msra.mxu0 0.0
  %296 = vmatprep.subr.mxu0 0.0
  %297 = vmatpush1.xpose.msra.mxu0 0.0
  %298 = vmatprep.subr.mxu0 0.0
  %299 = vmatpush1.xpose.msra.mxu0 0.0
  %300 = vmatprep.subr.mxu0 0.0
  %301 = vmatpush1.xpose.msra.mxu0 0.0
  %302 = vmatprep.subr.mxu0 0.0
  %303 = vmatpush1.xpose.msra.mxu0 0.0
  %304 = vmatprep.subr.mxu0 0.0
  %305 = vmatpush1.xpose.msra.mxu0 0.0
  %306 = vmatprep.subr.mxu0 0.0
  %307 = vmatpush1.xpose.msra.mxu0 0.0
  %308 = vmatprep.subr.mxu0 0.0
  %309 = vmatpush1.xpose.msra.mxu0 0.0
  %310 = vmatprep.subr.mxu0 0.0
  %311 = vmatpush1.xpose.msra.mxu0 0.0
  %312 = vmatprep.subr.mxu0 %v267
  %313 = vmatpush1.xpose.msra.mxu0 %v266
  %314 = vmatprep.subr.mxu0 0.0
  %315 = vmatpush2.xpose.msra.mxu0 0.0
  %316 = vmatprep.subr.mxu0 0.0
  %317 = vmatpush2.xpose.msra.mxu0 0.0
  %318 = vmatprep.subr.mxu0 0.0
  %319 = vmatpush2.xpose.msra.mxu0 0.0
  %320 = vmatprep.subr.mxu0 0.0
  %321 = vmatpush2.xpose.msra.mxu0 0.0
  %322 = vmatprep.subr.mxu0 0.0
  %323 = vmatpush2.xpose.msra.mxu0 0.0
  %324 = vmatprep.subr.mxu0 0.0
  %325 = vmatpush2.xpose.msra.mxu0 0.0
  %326 = vmatprep.subr.mxu0 0.0
  %327 = vmatpush2.xpose.msra.mxu0 0.0
  %328 = vmatprep.subr.mxu0 0.0
  %329 = vmatpush2.xpose.msra.mxu0 0.0
  %330 = vmatprep.subr.mxu0 0.0
  %331 = vmatpush2.xpose.msra.mxu0 0.0
  %332 = vmatprep.subr.mxu0 0.0
  %333 = vmatpush2.xpose.msra.mxu0 0.0
  %334 = vmatprep.subr.mxu0 0.0
  %335 = vmatpush2.xpose.msra.mxu0 0.0
  %336 = vmatprep.subr.mxu0 0.0
  %337 = vmatpush2.xpose.msra.mxu0 0.0
  %338 = vmatprep.subr.mxu0 0.0
  %339 = vmatpush2.xpose.msra.mxu0 0.0
  %340 = vmatprep.subr.mxu0 0.0
  %341 = vmatpush2.xpose.msra.mxu0 0.0
  %342 = vmatprep.subr.mxu0 0.0
  %343 = vmatpush2.xpose.msra.mxu0 0.0
  %344 = vmatprep.subr.mxu0 0.0
  %345 = vmatpush2.xpose.msra.mxu0 0.0
  %346 = vmatprep.mubr.f32.mxu0 %v279
  %347 = vmatmul.mubr.f32.gmra.mxu0 %v275
  %v348 = vpop.f32.mrf.mxu0
  %v349 = vadd.f32 %v270, %v348
  %v350 = vpop.f32.mrf.mxu0
  %351 = vdwg.mxu0
  %vm352 = vcmask 57344
  %353 = vst.msk [vmem:[%s7] sm:$0x1] %vm352, %v349
  // Predicated region
  $region30: #{critic_forward.1} parent=0 // pred_check
    _
  $region31: #{critic_forward.1} parent=0 // pred_check_branch
    %355 = sbr.rel (0) target = $region33
  $region32: #{critic_forward.1} parent=0 // pred_region
    _
  $region33: #{critic_forward.1} parent=0 // pred_fallthru
    _
  // Predicated region
  $region34: #{critic_forward.1} parent=0 // pred_check
    _
  $region35: #{critic_forward.1} parent=0 // pred_check_branch
    %357 = sbr.rel (0) target = $region37
  $region36: #{critic_forward.1} parent=0 // pred_region
    _
  $region37: #{critic_forward.1} parent=0 // pred_fallthru
    _

</llo_original>
